<compile_context>
chip_gen: v7x
topology: tpu7x:2x2x1
jax: 0.10.0
libtpu: 0.0.40
codegen_flags: <defaults>
</compile_context>

<pallas_src>
import functools

import jax
import jax.numpy as jnp
from jax.experimental import pallas as pl
from jax.experimental.pallas import tpu as pltpu

_LANE = 128          # vreg lane width: every feature dim padded to a multiple of this
_SUBLANE_BF16 = 16   # a bf16 vreg packs 16 sublanes; batch padded to a multiple of this
_NEG_BIG = -1e30     # finite "-inf" baked into the last layer's padded bias columns


def _round_up(n, m):
    return ((n + m - 1) // m) * m


def _pad2d(a, rows, cols, value=0.0):
    r, c = a.shape
    return jnp.pad(a, ((0, rows - r), (0, cols - c)), constant_values=value)


def init_mlp_params(key, layers):
    """Deterministic init mimicking nn.Linear's uniform(-1/sqrt(in), 1/sqrt(in)).

    Returns list of (W, b) with W shape (in, out), b shape (1, out) so y = x @ W + b
    (PyTorch stores W as (out, in) and computes x @ W.T + b)."""
    params = []
    for i in range(len(layers) - 1):
        fan_in, fan_out = layers[i], layers[i + 1]
        key, kw, kb = jax.random.split(key, 3)
        bound = 1.0 / jnp.sqrt(jnp.float32(fan_in))
        w = jax.random.uniform(kw, (fan_in, fan_out), jnp.float32, -bound, bound)
        b = jax.random.uniform(kb, (1, fan_out), jnp.float32, -bound, bound)
        params.append((w, b))
    return params


def prepare_params(params):
    """One-time prep (run once, off the per-call path):
      * pad every W to (round_up(in,128), round_up(out,128)) and cast to bf16,
      * keep biases in f32, padded to the lane width,
      * pad the LAST layer's bias columns with -1e30 so padded class logits are
        -1e30 by construction (no in-kernel mask needed).
    Returns a flat list [w0, b0, w1, b1, ...]."""
    num_layers = len(params)
    flat = []
    for i, (w, b) in enumerate(params):
        ki, ko = w.shape
        kp, op = _round_up(ki, _LANE), _round_up(ko, _LANE)
        w_p = _pad2d(w.astype(jnp.float32), kp, op).astype(jnp.bfloat16)
        pad_val = _NEG_BIG if i == num_layers - 1 else 0.0
        b_p = _pad2d(jnp.reshape(b, (1, -1)).astype(jnp.float32), 1, op, value=pad_val)
        flat.append(w_p)
        flat.append(b_p)
    return flat


def _make_fused_mlp_kernel(num_layers, valid_rows, valid_cols):
    """refs = (x, w0, b0, ..., w_{L-1}, b_{L-1}, out)."""

    def kernel(*refs):
        x_ref = refs[0]
        o_ref = refs[-1]
        h = x_ref[...]                                   # f32, (B_pad, in_pad)
        for i in range(num_layers):
            w_ref = refs[1 + 2 * i]                      # bf16, padded
            b_ref = refs[2 + 2 * i]                      # f32,  padded (last layer: -1e30 pad cols)
            # bf16 MXU operands, f32 accumulation, bias folded into the accumulator init.
            z = b_ref[...] + jnp.dot(h.astype(jnp.bfloat16), w_ref[...],
                                     preferred_element_type=jnp.float32)
            if i < num_layers - 1:
                h = jnp.maximum(z, 0.0)                  # ReLU, f32 VPU
            else:
                # log-softmax over the last dim; padded class cols are already -1e30,
                # so exp() underflows to exactly 0 and they don't touch the logsumexp.
                m = jnp.max(z, axis=-1, keepdims=True)
                shifted = z - m
                lse = jnp.log(jnp.sum(jnp.exp(shifted), axis=-1, keepdims=True))
                h = shifted - lse
        # store the unpadded result directly (masked lane store is trivial at this size)
        o_ref[...] = h[:valid_rows, :valid_cols].astype(o_ref.dtype)

    return kernel


@functools.partial(jax.jit, static_argnames=("out_features",))
def mlp_forward(x, flat_params, out_features):
    """Fused MLP forward.

    x           : (B, in_features) f32
    flat_params : output of prepare_params()
    returns     : (B, out_features) f32 log-softmax (dim=1) of the last layer.
    """
    num_layers = len(flat_params) // 2
    B, _ = x.shape
    B_pad = _round_up(B, _SUBLANE_BF16)
    in_pad = flat_params[0].shape[0]      # already lane-padded
    out_pad = flat_params[-1].shape[1]

    # the only per-call padding: the activation input
    x_p = _pad2d(x.astype(jnp.float32), B_pad, in_pad)

    # advisory cost estimate for the XLA scheduler
    flops = sum(2 * B_pad * w.shape[0] * w.shape[1] for w in flat_params[0::2])
    bytes_accessed = int(x_p.size) * 4 + B * out_features * 4
    bytes_accessed += sum(int(a.size) * a.dtype.itemsize for a in flat_params)
    transcendentals = B_pad * out_pad + B_pad          # exp per lane + log per row

    kernel = _make_fused_mlp_kernel(num_layers, B, out_features)

    return pl.pallas_call(
        kernel,
        out_shape=jax.ShapeDtypeStruct((B, out_features), jnp.float32),
        in_specs=[pl.BlockSpec(memory_space=pltpu.MemorySpace.VMEM)]
                 * (1 + len(flat_params)),
        out_specs=pl.BlockSpec(memory_space=pltpu.MemorySpace.VMEM),
        cost_estimate=pl.CostEstimate(
            flops=flops,
            transcendentals=transcendentals,
            bytes_accessed=bytes_accessed,
        ),
    )(x_p, *flat_params)


def _ref_forward(x, params):
    """Pure-JAX f32 reference matching the PyTorch module's forward."""
    h = x
    for i, (w, b) in enumerate(params):
        z = h @ w + b
        h = jnp.maximum(z, 0.0) if i < len(params) - 1 else jax.nn.log_softmax(z, axis=-1)
    return h


if __name__ == "__main__":
    # MLP(layers=[16, 32, 32, 8]) => Linear(16,32)+ReLU, Linear(32,32)+ReLU,
    #                                Linear(32,8)+LogSoftmax
    layers = [16, 32, 32, 8]
    batch = 8

    key = jax.random.PRNGKey(0)
    key, kx = jax.random.split(key)
    x = jax.random.normal(kx, (batch, layers[0]), dtype=jnp.float32)

    params = init_mlp_params(key, layers)

    # one-time parameter prep (padding + bf16 cast), off the per-call path
    flat = prepare_params(params)
    flat = [jax.block_until_ready(a) for a in flat]

    out = mlp_forward(x, flat, out_features=layers[-1])
    out = jax.block_until_ready(out)
    assert out.shape == (batch, layers[-1])

    # correctness vs pure-JAX f32 reference (tolerance relaxed for bf16 MXU operands)
    ref = _ref_forward(x, params)
    max_err = float(jnp.max(jnp.abs(out - ref)))
    assert max_err < 2e-2, max_err

    # log-softmax rows should sum (in prob space) to ~1 — checks the padded-class bias trick
    row_sums = jnp.sum(jnp.exp(out), axis=-1)
    assert bool(jnp.all(jnp.abs(row_sums - 1.0) < 1e-3))

    print("KERNEL_OK")
</pallas_src>

<mosaic_0001>
module attributes {stable_mosaic.version = 11 : i64} {
  func.func @kernel(%arg0: memref<16x128xf32, #tpu.memory_space<vmem>>, %arg1: memref<128x128xbf16, #tpu.memory_space<vmem>>, %arg2: memref<1x128xf32, #tpu.memory_space<vmem>>, %arg3: memref<128x128xbf16, #tpu.memory_space<vmem>>, %arg4: memref<1x128xf32, #tpu.memory_space<vmem>>, %arg5: memref<128x128xbf16, #tpu.memory_space<vmem>>, %arg6: memref<1x128xf32, #tpu.memory_space<vmem>>, %arg7: memref<8x8xf32, #tpu.memory_space<vmem>>) attributes {dimension_semantics = [], scalar_prefetch = 0 : i64, scratch_operands = 0 : i64, tpu.core_type = #tpu.core_type<tc>} {
    %c0 = arith.constant 0 : index
    %c0_0 = arith.constant 0 : index
    %0 = vector.load %arg0[%c0, %c0_0] : memref<16x128xf32, #tpu.memory_space<vmem>>, vector<16x128xf32>
    %c0_1 = arith.constant 0 : index
    %c0_2 = arith.constant 0 : index
    %1 = vector.load %arg2[%c0_1, %c0_2] : memref<1x128xf32, #tpu.memory_space<vmem>>, vector<1x128xf32>
    %2 = arith.truncf %0 : vector<16x128xf32> to vector<16x128xbf16>
    %c0_3 = arith.constant 0 : index
    %c0_4 = arith.constant 0 : index
    %3 = vector.load %arg1[%c0_3, %c0_4] : memref<128x128xbf16, #tpu.memory_space<vmem>>, vector<128x128xbf16>
    %cst = arith.constant dense<0.000000e+00> : vector<16x128xf32>
    %4 = tpu.matmul %2, %3, %cst {dimension_numbers = #tpu.dot_dimension_numbers<[1], [0], [0], [1], [0, 0, 1, 1], [], []>} : vector<16x128xbf16>, vector<128x128xbf16>, vector<16x128xf32> -> vector<16x128xf32>
    %5 = vector.broadcast %1 : vector<1x128xf32> to vector<16x128xf32>
    %6 = arith.addf %5, %4 : vector<16x128xf32>
    %cst_5 = arith.constant 0.000000e+00 : f32
    %7 = vector.broadcast %cst_5 : f32 to vector<16x128xf32>
    %8 = arith.maximumf %6, %7 : vector<16x128xf32>
    %c0_6 = arith.constant 0 : index
    %c0_7 = arith.constant 0 : index
    %9 = vector.load %arg4[%c0_6, %c0_7] : memref<1x128xf32, #tpu.memory_space<vmem>>, vector<1x128xf32>
    %10 = arith.truncf %8 : vector<16x128xf32> to vector<16x128xbf16>
    %c0_8 = arith.constant 0 : index
    %c0_9 = arith.constant 0 : index
    %11 = vector.load %arg3[%c0_8, %c0_9] : memref<128x128xbf16, #tpu.memory_space<vmem>>, vector<128x128xbf16>
    %cst_10 = arith.constant dense<0.000000e+00> : vector<16x128xf32>
    %12 = tpu.matmul %10, %11, %cst_10 {dimension_numbers = #tpu.dot_dimension_numbers<[1], [0], [0], [1], [0, 0, 1, 1], [], []>} : vector<16x128xbf16>, vector<128x128xbf16>, vector<16x128xf32> -> vector<16x128xf32>
    %13 = vector.broadcast %9 : vector<1x128xf32> to vector<16x128xf32>
    %14 = arith.addf %13, %12 : vector<16x128xf32>
    %cst_11 = arith.constant 0.000000e+00 : f32
    %15 = vector.broadcast %cst_11 : f32 to vector<16x128xf32>
    %16 = arith.maximumf %14, %15 : vector<16x128xf32>
    %c0_12 = arith.constant 0 : index
    %c0_13 = arith.constant 0 : index
    %17 = vector.load %arg6[%c0_12, %c0_13] : memref<1x128xf32, #tpu.memory_space<vmem>>, vector<1x128xf32>
    %18 = arith.truncf %16 : vector<16x128xf32> to vector<16x128xbf16>
    %c0_14 = arith.constant 0 : index
    %c0_15 = arith.constant 0 : index
    %19 = vector.load %arg5[%c0_14, %c0_15] : memref<128x128xbf16, #tpu.memory_space<vmem>>, vector<128x128xbf16>
    %cst_16 = arith.constant dense<0.000000e+00> : vector<16x128xf32>
    %20 = tpu.matmul %18, %19, %cst_16 {dimension_numbers = #tpu.dot_dimension_numbers<[1], [0], [0], [1], [0, 0, 1, 1], [], []>} : vector<16x128xbf16>, vector<128x128xbf16>, vector<16x128xf32> -> vector<16x128xf32>
    %21 = vector.broadcast %17 : vector<1x128xf32> to vector<16x128xf32>
    %22 = arith.addf %21, %20 : vector<16x128xf32>
    %cst_17 = arith.constant dense<0xFF800000> : vector<16xf32>
    %23 = vector.multi_reduction <maximumf>, %22, %cst_17 [1] : vector<16x128xf32> to vector<16xf32>
    %24 = vector.shape_cast %23 : vector<16xf32> to vector<16x1xf32>
    %25 = vector.broadcast %24 : vector<16x1xf32> to vector<16x128xf32>
    %26 = arith.subf %22, %25 : vector<16x128xf32>
    %27 = math.exp %26 : vector<16x128xf32>
    %cst_18 = arith.constant dense<0.000000e+00> : vector<16xf32>
    %28 = vector.multi_reduction <add>, %27, %cst_18 [1] : vector<16x128xf32> to vector<16xf32>
    %29 = vector.shape_cast %28 : vector<16xf32> to vector<16x1xf32>
    %30 = math.log %29 : vector<16x1xf32>
    %31 = vector.broadcast %30 : vector<16x1xf32> to vector<16x128xf32>
    %32 = arith.subf %26, %31 : vector<16x128xf32>
    %33 = vector.extract_strided_slice %32 {offsets = [0, 0], sizes = [8, 8], strides = [1, 1]} : vector<16x128xf32> to vector<8x8xf32>
    %c0_19 = arith.constant 0 : index
    %c0_20 = arith.constant 0 : index
    %34 = vector.load %arg7[%c0_19, %c0_20] : memref<8x8xf32, #tpu.memory_space<vmem>>, vector<8x8xf32>
    tpu.vector_store %arg7[%c0_19, %c0_20], %33 {strides = array<i32>} : memref<8x8xf32, #tpu.memory_space<vmem>>, vector<8x8xf32>,
    return
  }
}

</mosaic_0001>

<llo_original>
// kernel: mlp_forward.1
$region0: #{mlp_forward.1}
  #allocation0 [shape = 'u32[]', space=smem, size = 0x4, offset = 0x4, fixed_abs, tag = 'smem constant byte address 0x4 - core index']
  #allocation1 [shape = 'u32[144,128]{1,0:T(1,128)}', space=vmem, size = 0x12000, scoped, tag = 'internal scratch']
  %s0 = inlined_call_operand.vmem [shape: f32[16,128], index: 0, kind: input, shape index: {}]
  %s1 = inlined_call_operand.hbm [shape: bf16[128,128], index: 1, kind: input, shape index: {}]
  %s2 = inlined_call_operand.vmem [shape: f32[1,128], index: 2, kind: input, shape index: {}]
  %s3 = inlined_call_operand.hbm [shape: bf16[128,128], index: 3, kind: input, shape index: {}]
  %s4 = inlined_call_operand.vmem [shape: f32[1,128], index: 4, kind: input, shape index: {}]
  %s5 = inlined_call_operand.hbm [shape: bf16[128,128], index: 5, kind: input, shape index: {}]
  %s6 = inlined_call_operand.vmem [shape: f32[1,128], index: 6, kind: input, shape index: {}]
  %s7 = inlined_call_operand.hbm [shape: f32[8,8], index: 7, kind: output, shape index: {}]
  %s8 = sld [smem:[#allocation0]]
  $region50: #{mlp_forward.1} parent=0
    _
  %s10 = ssub.s32 1, %s8
  %s11 = scalar_select 0, %s10, %s8
  $region1: #{mlp_forward.1} parent=0
    #allocation2 [shape = 'u8[32768]{0}', space=vmem, size = 0x8000, scoped, tag = 'input window, operand 1, single buffered']
    #allocation3 [shape = 's32[1]{0}', space=sflag, size = 0x4, scoped, tag = 'scoped memory for mlp_forward.1']
    #allocation4 [shape = 's32[1]{0}', space=sflag, size = 0x4, scoped, tag = 'scoped memory for mlp_forward.1']
    #allocation5 [shape = 'u8[32768]{0}', space=vmem, size = 0x8000, scoped, tag = 'input window, operand 3, single buffered']
    #allocation6 [shape = 's32[1]{0}', space=sflag, size = 0x4, scoped, tag = 'scoped memory for mlp_forward.1']
    #allocation7 [shape = 'u8[32768]{0}', space=vmem, size = 0x8000, scoped, tag = 'input window, operand 5, single buffered']
    #allocation8 [shape = 'u8[4096]{0}', space=vmem, size = 0x1000, scoped, tag = 'output window, operand 0, single buffered']
    %12 = vsyncpa [#allocation3], 0
    %13 = vsyncpa [#allocation6], 0
    %14 = vsyncpa [#allocation4], 0
    // Predicated region
    $region2: #{mlp_forward.1} parent=1 // pred_check
      _
    $region3: #{mlp_forward.1} parent=1 // pred_check_branch
      %16 = sbr.rel (0) target = $region5
    $region4: #{mlp_forward.1} parent=1 // pred_region
      _
    $region5: #{mlp_forward.1} parent=1 // pred_fallthru
      _
    // Predicated region
    $region6: #{mlp_forward.1} parent=1 // pred_check
      _
    $region7: #{mlp_forward.1} parent=1 // pred_check_branch
      %18 = sbr.rel (0) target = $region9
    $region8: #{mlp_forward.1} parent=1 // pred_region
      %s20 = ssub.s32 1024, 1024
      %21 = vsyncadd [#allocation3], %s20
      %s22 = sshll.u32 [#allocation2], 4
      %s23 = int_to_ptr.vmem [resolvable:$true] %s22
      %28 = dma.hbm_to_vmem [thread:$0]  %s1, 1024, %s23, [#allocation3], 64, 64, 4
    $region9: #{mlp_forward.1} parent=1 // pred_fallthru
      _
    // Predicated region
    $region10: #{mlp_forward.1} parent=1 // pred_check
      _
    $region11: #{mlp_forward.1} parent=1 // pred_check_branch
      %30 = sbr.rel (0) target = $region13
    $region12: #{mlp_forward.1} parent=1 // pred_region
      _
    $region13: #{mlp_forward.1} parent=1 // pred_fallthru
      _
    // Predicated region
    $region14: #{mlp_forward.1} parent=1 // pred_check
      _
    $region15: #{mlp_forward.1} parent=1 // pred_check_branch
      %32 = sbr.rel (0) target = $region17
    $region16: #{mlp_forward.1} parent=1 // pred_region
      %s34 = ssub.s32 1024, 1024
      %35 = vsyncadd [#allocation6], %s34
      %s36 = sshll.u32 [#allocation5], 4
      %s37 = int_to_ptr.vmem [resolvable:$true] %s36
      %42 = dma.hbm_to_vmem [thread:$0]  %s3, 1024, %s37, [#allocation6], 64, 64, 4
    $region17: #{mlp_forward.1} parent=1 // pred_fallthru
      _
    // Predicated region
    $region18: #{mlp_forward.1} parent=1 // pred_check
      _
    $region19: #{mlp_forward.1} parent=1 // pred_check_branch
      %44 = sbr.rel (0) target = $region21
    $region20: #{mlp_forward.1} parent=1 // pred_region
      _
    $region21: #{mlp_forward.1} parent=1 // pred_fallthru
      _
    // Predicated region
    $region22: #{mlp_forward.1} parent=1 // pred_check
      _
    $region23: #{mlp_forward.1} parent=1 // pred_check_branch
      %46 = sbr.rel (0) target = $region25
    $region24: #{mlp_forward.1} parent=1 // pred_region
      %s48 = ssub.s32 1024, 1024
      %49 = vsyncadd [#allocation6], %s48
      %s50 = sshll.u32 [#allocation7], 4
      %s51 = int_to_ptr.vmem [resolvable:$true] %s50
      %56 = dma.hbm_to_vmem [thread:$0]  %s5, 1024, %s51, [#allocation6], 64, 64, 4
    $region25: #{mlp_forward.1} parent=1 // pred_fallthru
      _
    // Predicated region
    $region26: #{mlp_forward.1} parent=1 // pred_check
      _
    $region27: #{mlp_forward.1} parent=1 // pred_check_branch
      %58 = sbr.rel (0) target = $region29
    $region28: #{mlp_forward.1} parent=1 // pred_region
      _
    $region29: #{mlp_forward.1} parent=1 // pred_fallthru
      _
    // Predicated region
    $region30: #{mlp_forward.1} parent=1 // pred_check
      _
    $region31: #{mlp_forward.1} parent=1 // pred_check_branch
      %60 = sbr.rel (0) target = $region33
    $region32: #{mlp_forward.1} parent=1 // pred_region
      %61 = dma.done [#allocation3], 1024
    $region33: #{mlp_forward.1} parent=1 // pred_fallthru
      _
    // Predicated region
    $region34: #{mlp_forward.1} parent=1 // pred_check
      _
    $region35: #{mlp_forward.1} parent=1 // pred_check_branch
      %63 = sbr.rel (0) target = $region37
    $region36: #{mlp_forward.1} parent=1 // pred_region
      %64 = dma.done [#allocation6], 1024
    $region37: #{mlp_forward.1} parent=1 // pred_fallthru
      _
    // Predicated region
    $region38: #{mlp_forward.1} parent=1 // pred_check
      _
    $region39: #{mlp_forward.1} parent=1 // pred_check_branch
      %66 = sbr.rel (0) target = $region41
    $region40: #{mlp_forward.1} parent=1 // pred_region
      %67 = dma.done [#allocation6], 1024
    $region41: #{mlp_forward.1} parent=1 // pred_fallthru
      _
    %v69 = vld [vmem:[%s0] sm:$0xff]
    %v70 = vld [vmem:[%s0 + $0x8] sm:$0xff]
    %v71 = vld [vmem:[%s2] sm:$0x1]
    %v72 = vpack.c.bf16 %v70, %v69
    %v73 = vld [vmem:[#allocation2] sm:$0xf]
    %v74 = vld [vmem:[#allocation2 + $0x4] sm:$0xf]
    %v75 = vld [vmem:[#allocation2 + $0x8] sm:$0xf]
    %v76 = vld [vmem:[#allocation2 + $0xc] sm:$0xf]
    %v77 = vld [vmem:[#allocation2 + $0x10] sm:$0xf]
    %v78 = vld [vmem:[#allocation2 + $0x14] sm:$0xf]
    %v79 = vld [vmem:[#allocation2 + $0x18] sm:$0xf]
    %v80 = vld [vmem:[#allocation2 + $0x1c] sm:$0xf]
    %v81 = vld [vmem:[#allocation2 + $0x20] sm:$0xf]
    %v82 = vld [vmem:[#allocation2 + $0x24] sm:$0xf]
    %v83 = vld [vmem:[#allocation2 + $0x28] sm:$0xf]
    %v84 = vld [vmem:[#allocation2 + $0x2c] sm:$0xf]
    %v85 = vld [vmem:[#allocation2 + $0x30] sm:$0xf]
    %v86 = vld [vmem:[#allocation2 + $0x34] sm:$0xf]
    %v87 = vld [vmem:[#allocation2 + $0x38] sm:$0xf]
    %v88 = vld [vmem:[#allocation2 + $0x3c] sm:$0xf]
    %v105 = vunpack.c.l.b16 %v73
    %v106 = vunpack.c.l.b16 %v74
    %v107 = vunpack.c.l.b16 %v75
    %v108 = vunpack.c.l.b16 %v76
    %v109 = vunpack.c.l.b16 %v77
    %v110 = vunpack.c.l.b16 %v78
    %v111 = vunpack.c.l.b16 %v79
    %v112 = vunpack.c.l.b16 %v80
    %v113 = vunpack.c.l.b16 %v81
    %v114 = vunpack.c.l.b16 %v82
    %v115 = vunpack.c.l.b16 %v83
    %v116 = vunpack.c.l.b16 %v84
    %v117 = vunpack.c.l.b16 %v85
    %v118 = vunpack.c.l.b16 %v86
    %v119 = vunpack.c.l.b16 %v87
    %v120 = vunpack.c.l.b16 %v88
    %v121 = vpack.c.b16 %v106, %v105
    %v122 = vpack.c.b16 %v108, %v107
    %v123 = vpack.c.b16 %v110, %v109
    %v124 = vpack.c.b16 %v112, %v111
    %v125 = vpack.c.b16 %v114, %v113
    %v126 = vpack.c.b16 %v116, %v115
    %v127 = vpack.c.b16 %v118, %v117
    %v128 = vpack.c.b16 %v120, %v119
    %137 = vmatprep.subr.bf16.mxu0 0
    %138 = vmatpush1.bf16.msra.mxu0 %v121
    %139 = vmatprep.subr.bf16.mxu0 0
    %140 = vmatpush1.bf16.msra.mxu0 %v122
    %141 = vmatprep.subr.bf16.mxu0 0
    %142 = vmatpush1.bf16.msra.mxu0 %v123
    %143 = vmatprep.subr.bf16.mxu0 0
    %144 = vmatpush1.bf16.msra.mxu0 %v124
    %145 = vmatprep.subr.bf16.mxu0 0
    %146 = vmatpush1.bf16.msra.mxu0 %v125
    %147 = vmatprep.subr.bf16.mxu0 0
    %148 = vmatpush1.bf16.msra.mxu0 %v126
    %149 = vmatprep.subr.bf16.mxu0 0
    %150 = vmatpush1.bf16.msra.mxu0 %v127
    %151 = vmatprep.subr.bf16.mxu0 0
    %152 = vmatpush1.bf16.msra.mxu0 %v128
    %153 = vmatprep.subr.bf16.mxu0 0
    %154 = vmatpush1.bf16.msra.mxu0 0
    %155 = vmatprep.subr.bf16.mxu0 0
    %156 = vmatpush1.bf16.msra.mxu0 0
    %157 = vmatprep.subr.bf16.mxu0 0
    %158 = vmatpush1.bf16.msra.mxu0 0
    %159 = vmatprep.subr.bf16.mxu0 0
    %160 = vmatpush1.bf16.msra.mxu0 0
    %161 = vmatprep.subr.bf16.mxu0 0
    %162 = vmatpush1.bf16.msra.mxu0 0
    %163 = vmatprep.subr.bf16.mxu0 0
    %164 = vmatpush1.bf16.msra.mxu0 0
    %165 = vmatprep.subr.bf16.mxu0 0
    %166 = vmatpush1.bf16.msra.mxu0 0
    %167 = vmatprep.subr.bf16.mxu0 0
    %168 = vmatpush1.bf16.msra.mxu0 0
    %169 = vmatprep.mubr.bf16.mxu0 0
    %170 = vmatmul.mubr.bf16.gmra.mrb[0].mxu0 %v72
    %v171 = vpop.f32.mrb[0].mxu0
    %v172 = vadd.f32 0.0, %v171
    %v173 = vpop.f32.mrb[0].mxu0
    %v174 = vpop.f32.mrb[0].mxu0
    %v175 = vadd.f32 0.0, %v174
    %v176 = vpop.f32.mrb[0].mxu0
    %177 = vdwg.mxu0
    %v179 = vlaneseq
    %v180 = vshrl.u32 %v179, 7
    %v181 = vsub.s32 0, %v180
    %v182 = vrot.slane %v71, %v181
    %v184 = vadd.f32 %v182, %v172
    %v185 = vadd.f32 %v182, %v175
    %v186 = vmax.f32 %v184, 0.0
    %v187 = vmax.f32 %v185, 0.0
    %v188 = vld [vmem:[%s4] sm:$0x1]
    %v189 = vpack.c.bf16 %v187, %v186
    %v190 = vld [vmem:[#allocation5] sm:$0xf]
    %v191 = vld [vmem:[#allocation5 + $0x4] sm:$0xf]
    %v192 = vld [vmem:[#allocation5 + $0x8] sm:$0xf]
    %v193 = vld [vmem:[#allocation5 + $0xc] sm:$0xf]
    %v194 = vld [vmem:[#allocation5 + $0x10] sm:$0xf]
    %v195 = vld [vmem:[#allocation5 + $0x14] sm:$0xf]
    %v196 = vld [vmem:[#allocation5 + $0x18] sm:$0xf]
    %v197 = vld [vmem:[#allocation5 + $0x1c] sm:$0xf]
    %v198 = vld [vmem:[#allocation5 + $0x20] sm:$0xf]
    %v199 = vld [vmem:[#allocation5 + $0x24] sm:$0xf]
    %v200 = vld [vmem:[#allocation5 + $0x28] sm:$0xf]
    %v201 = vld [vmem:[#allocation5 + $0x2c] sm:$0xf]
    %v202 = vld [vmem:[#allocation5 + $0x30] sm:$0xf]
    %v203 = vld [vmem:[#allocation5 + $0x34] sm:$0xf]
    %v204 = vld [vmem:[#allocation5 + $0x38] sm:$0xf]
    %v205 = vld [vmem:[#allocation5 + $0x3c] sm:$0xf]
    %v222 = vunpack.c.l.b16 %v190
    %v223 = vunpack.c.l.b16 %v191
    %v224 = vunpack.c.l.b16 %v192
    %v225 = vunpack.c.l.b16 %v193
    %v226 = vunpack.c.l.b16 %v194
    %v227 = vunpack.c.l.b16 %v195
    %v228 = vunpack.c.l.b16 %v196
    %v229 = vunpack.c.l.b16 %v197
    %v230 = vunpack.c.l.b16 %v198
    %v231 = vunpack.c.l.b16 %v199
    %v232 = vunpack.c.l.b16 %v200
    %v233 = vunpack.c.l.b16 %v201
    %v234 = vunpack.c.l.b16 %v202
    %v235 = vunpack.c.l.b16 %v203
    %v236 = vunpack.c.l.b16 %v204
    %v237 = vunpack.c.l.b16 %v205
    %v238 = vpack.c.b16 %v223, %v222
    %v239 = vpack.c.b16 %v225, %v224
    %v240 = vpack.c.b16 %v227, %v226
    %v241 = vpack.c.b16 %v229, %v228
    %v242 = vpack.c.b16 %v231, %v230
    %v243 = vpack.c.b16 %v233, %v232
    %v244 = vpack.c.b16 %v235, %v234
    %v245 = vpack.c.b16 %v237, %v236
    %254 = vmatprep.subr.bf16.mxu0 0
    %255 = vmatpush1.bf16.msra.mxu0 %v238
    %256 = vmatprep.subr.bf16.mxu0 0
    %257 = vmatpush1.bf16.msra.mxu0 %v239
    %258 = vmatprep.subr.bf16.mxu0 0
    %259 = vmatpush1.bf16.msra.mxu0 %v240
    %260 = vmatprep.subr.bf16.mxu0 0
    %261 = vmatpush1.bf16.msra.mxu0 %v241
    %262 = vmatprep.subr.bf16.mxu0 0
    %263 = vmatpush1.bf16.msra.mxu0 %v242
    %264 = vmatprep.subr.bf16.mxu0 0
    %265 = vmatpush1.bf16.msra.mxu0 %v243
    %266 = vmatprep.subr.bf16.mxu0 0
    %267 = vmatpush1.bf16.msra.mxu0 %v244
    %268 = vmatprep.subr.bf16.mxu0 0
    %269 = vmatpush1.bf16.msra.mxu0 %v245
    %270 = vmatprep.subr.bf16.mxu0 0
    %271 = vmatpush1.bf16.msra.mxu0 0
    %272 = vmatprep.subr.bf16.mxu0 0
    %273 = vmatpush1.bf16.msra.mxu0 0
    %274 = vmatprep.subr.bf16.mxu0 0
    %275 = vmatpush1.bf16.msra.mxu0 0
    %276 = vmatprep.subr.bf16.mxu0 0
    %277 = vmatpush1.bf16.msra.mxu0 0
    %278 = vmatprep.subr.bf16.mxu0 0
    %279 = vmatpush1.bf16.msra.mxu0 0
    %280 = vmatprep.subr.bf16.mxu0 0
    %281 = vmatpush1.bf16.msra.mxu0 0
    %282 = vmatprep.subr.bf16.mxu0 0
    %283 = vmatpush1.bf16.msra.mxu0 0
    %284 = vmatprep.subr.bf16.mxu0 0
    %285 = vmatpush1.bf16.msra.mxu0 0
    %286 = vmatprep.mubr.bf16.mxu0 0
    %287 = vmatmul.mubr.bf16.gmra.mrb[0].mxu0 %v189
    %v288 = vpop.f32.mrb[0].mxu0
    %v289 = vadd.f32 0.0, %v288
    %v290 = vpop.f32.mrb[0].mxu0
    %v291 = vpop.f32.mrb[0].mxu0
    %v292 = vadd.f32 0.0, %v291
    %v293 = vpop.f32.mrb[0].mxu0
    %294 = vdwg.mxu0
    %v296 = vlaneseq
    %v297 = vshrl.u32 %v296, 7
    %v298 = vsub.s32 0, %v297
    %v299 = vrot.slane %v188, %v298
    %v301 = vadd.f32 %v299, %v289
    %v302 = vadd.f32 %v299, %v292
    %v303 = vmax.f32 %v301, 0.0
    %v304 = vmax.f32 %v302, 0.0
    %v305 = vld [vmem:[%s6] sm:$0x1]
    %v306 = vpack.c.bf16 %v304, %v303
    %v307 = vld [vmem:[#allocation7] sm:$0xf]
    %v308 = vld [vmem:[#allocation7 + $0x4] sm:$0xf]
    %v309 = vld [vmem:[#allocation7 + $0x8] sm:$0xf]
    %v310 = vld [vmem:[#allocation7 + $0xc] sm:$0xf]
    %v311 = vld [vmem:[#allocation7 + $0x10] sm:$0xf]
    %v312 = vld [vmem:[#allocation7 + $0x14] sm:$0xf]
    %v313 = vld [vmem:[#allocation7 + $0x18] sm:$0xf]
    %v314 = vld [vmem:[#allocation7 + $0x1c] sm:$0xf]
    %v315 = vld [vmem:[#allocation7 + $0x20] sm:$0xf]
    %v316 = vld [vmem:[#allocation7 + $0x24] sm:$0xf]
    %v317 = vld [vmem:[#allocation7 + $0x28] sm:$0xf]
    %v318 = vld [vmem:[#allocation7 + $0x2c] sm:$0xf]
    %v319 = vld [vmem:[#allocation7 + $0x30] sm:$0xf]
    %v320 = vld [vmem:[#allocation7 + $0x34] sm:$0xf]
    %v321 = vld [vmem:[#allocation7 + $0x38] sm:$0xf]
    %v322 = vld [vmem:[#allocation7 + $0x3c] sm:$0xf]
    %v339 = vunpack.c.l.b16 %v307
    %v340 = vunpack.c.l.b16 %v308
    %v341 = vunpack.c.l.b16 %v309
    %v342 = vunpack.c.l.b16 %v310
    %v343 = vunpack.c.l.b16 %v311
    %v344 = vunpack.c.l.b16 %v312
    %v345 = vunpack.c.l.b16 %v313
    %v346 = vunpack.c.l.b16 %v314
    %v347 = vunpack.c.l.b16 %v315
    %v348 = vunpack.c.l.b16 %v316
    %v349 = vunpack.c.l.b16 %v317
    %v350 = vunpack.c.l.b16 %v318
    %v351 = vunpack.c.l.b16 %v319
    %v352 = vunpack.c.l.b16 %v320
    %v353 = vunpack.c.l.b16 %v321
    %v354 = vunpack.c.l.b16 %v322
    %v355 = vpack.c.b16 %v340, %v339
    %v356 = vpack.c.b16 %v342, %v341
    %v357 = vpack.c.b16 %v344, %v343
    %v358 = vpack.c.b16 %v346, %v345
    %v359 = vpack.c.b16 %v348, %v347
    %v360 = vpack.c.b16 %v350, %v349
    %v361 = vpack.c.b16 %v352, %v351
    %v362 = vpack.c.b16 %v354, %v353
    %371 = vmatprep.subr.bf16.mxu0 0
    %372 = vmatpush1.bf16.msra.mxu0 %v355
    %373 = vmatprep.subr.bf16.mxu0 0
    %374 = vmatpush1.bf16.msra.mxu0 %v356
    %375 = vmatprep.subr.bf16.mxu0 0
    %376 = vmatpush1.bf16.msra.mxu0 %v357
    %377 = vmatprep.subr.bf16.mxu0 0
    %378 = vmatpush1.bf16.msra.mxu0 %v358
    %379 = vmatprep.subr.bf16.mxu0 0
    %380 = vmatpush1.bf16.msra.mxu0 %v359
    %381 = vmatprep.subr.bf16.mxu0 0
    %382 = vmatpush1.bf16.msra.mxu0 %v360
    %383 = vmatprep.subr.bf16.mxu0 0
    %384 = vmatpush1.bf16.msra.mxu0 %v361
    %385 = vmatprep.subr.bf16.mxu0 0
    %386 = vmatpush1.bf16.msra.mxu0 %v362
    %387 = vmatprep.subr.bf16.mxu0 0
    %388 = vmatpush1.bf16.msra.mxu0 0
    %389 = vmatprep.subr.bf16.mxu0 0
    %390 = vmatpush1.bf16.msra.mxu0 0
    %391 = vmatprep.subr.bf16.mxu0 0
    %392 = vmatpush1.bf16.msra.mxu0 0
    %393 = vmatprep.subr.bf16.mxu0 0
    %394 = vmatpush1.bf16.msra.mxu0 0
    %395 = vmatprep.subr.bf16.mxu0 0
    %396 = vmatpush1.bf16.msra.mxu0 0
    %397 = vmatprep.subr.bf16.mxu0 0
    %398 = vmatpush1.bf16.msra.mxu0 0
    %399 = vmatprep.subr.bf16.mxu0 0
    %400 = vmatpush1.bf16.msra.mxu0 0
    %401 = vmatprep.subr.bf16.mxu0 0
    %402 = vmatpush1.bf16.msra.mxu0 0
    %403 = vmatprep.mubr.bf16.mxu0 0
    %404 = vmatmul.mubr.bf16.gmra.mrb[0].mxu0 %v306
    %v405 = vpop.f32.mrb[0].mxu0
    %v406 = vadd.f32 0.0, %v405
    %v407 = vpop.f32.mrb[0].mxu0
    %v408 = vpop.f32.mrb[0].mxu0
    %v409 = vpop.f32.mrb[0].mxu0
    %410 = vdwg.mxu0
    %v412 = vlaneseq
    %v413 = vshrl.u32 %v412, 7
    %v414 = vsub.s32 0, %v413
    %v415 = vrot.slane %v305, %v414
    %v417 = vadd.f32 %v415, %v406
    %418 = vmax.xlane.f32.xlu0 %v417
    %v419 = vpop.xlane.xlu0 %418
    %v420 = vsub.f32 %v417, %v419
    %v421 = vmul.f32 %v420, 1.442695
    %v422 = vpow.pop %v421
    %423 = vadd.xlane.f32.xlu0 %v422
    %v424 = vpop.xlane.xlu0 %423
    %v425 = vlog2.pop %v424
    %v426 = vmul.f32 %v425, 0.6931472
    %v427 = vsub.f32 %v420, %v426
    %vm428 = vcmask 64512
    %429 = vst.msk [vmem:[#allocation8] sm:$0xff] %vm428, %v427
    // Predicated region
    $region42: #{mlp_forward.1} parent=1 // pred_check
      _
    $region43: #{mlp_forward.1} parent=1 // pred_check_branch
      %431 = sbr.rel (0) target = $region45
    $region44: #{mlp_forward.1} parent=1 // pred_region
      %s433 = ssub.s32 128, 128
      %434 = vsyncadd [#allocation4], %s433
      %s436 = sshll.u32 [#allocation8], 4
      %s437 = int_to_ptr.vmem [resolvable:$true] %s436
      %439 = dma.vmem_to_hbm [thread:$0]  %s437, 128, %s7, [#allocation4]
    $region45: #{mlp_forward.1} parent=1 // pred_fallthru
      _
    // Predicated region
    $region46: #{mlp_forward.1} parent=1 // pred_check
      _
    $region47: #{mlp_forward.1} parent=1 // pred_check_branch
      %441 = sbr.rel (0) target = $region49
    $region48: #{mlp_forward.1} parent=1 // pred_region
      %442 = dma.done [#allocation4], 128
    $region49: #{mlp_forward.1} parent=1 // pred_fallthru
      _
    %443 = vsyncpa [#allocation3], 1
    %444 = vsyncpa [#allocation6], 1
    %445 = vsyncpa [#allocation4], 1

</llo_original>
